<compile_context>
chip_gen: v7x
topology: tpu7x:2x2x1
jax: 0.10.0
libtpu: 0.0.40
codegen_flags: <defaults>
</compile_context>

<pallas_src>
import jax
import jax.numpy as jnp
from jax.experimental import pallas as pl
from jax.experimental.pallas import tpu as pltpu

# ---- "config" (config.model.MLP.* / config.dataloader.Moon.*) --------------
N_IN = 2            # moons dataset: 2 input features
N_HIDDEN = 32       # n_hidden
N_LAYERS = 2        # n_layers (hidden Linear+act+dropout blocks)
N_ADAPT = N_HIDDEN // 2
N_OUT = 2           # out_class always 2
N_CLASSES = 2       # Moon.n_classes (aux head)
N_HEADS_OUT = N_OUT + N_CLASSES
BATCH = 8
DROPOUT_P = 0.1     # unused at inference (eval mode -> identity)

H = N_HIDDEN

# ---- packed-parameter slab layout (all rows are 8-aligned blocks, 32 lanes) --
W_IN_OFF = 0                          # rows 0:8    (real rows 0:N_IN)
W_H_OFF = 8                           # rows 8:8+L*H
W_AD_OFF = W_H_OFF + N_LAYERS * H     # rows ..:+H   ((H, N_ADAPT) zero-padded to (H, H))
W_HEAD_OFF = W_AD_OFF + H             # rows ..:+H   ((N_ADAPT, 4) zero-padded to (H, H))
B_OFF = W_HEAD_OFF + H                # bias block: b_in, b_h[0..L-1], b_ad, b_head
N_BIAS_ROWS = 2 + N_LAYERS + 1        # = 5 for L=2
BIAS_BLOCK = 8 * pl.cdiv(N_BIAS_ROWS, 8)
TOTAL_ROWS = B_OFF + BIAS_BLOCK       # = 144 for L=2


def mlp_kernel(x_ref, p_ref, o_ref):
    x = x_ref[...]                                              # (B, 2)

    # in_layer: K=2 contraction done on the VPU (two broadcast FMAs), skip MXU.
    h = (x[:, 0:1] * p_ref[W_IN_OFF + 0:W_IN_OFF + 1, :]
         + x[:, 1:2] * p_ref[W_IN_OFF + 1:W_IN_OFF + 2, :]
         + p_ref[B_OFF:B_OFF + 1, :])
    h = jnp.maximum(h, 0.0)                                     # (B, H)

    # hidden stack: Linear -> ReLU -> Dropout (identity in eval), unrolled.
    # TODO(synk): training-mode dropout (pltpu.prng_random_bits mask); eval mode is identity.
    for i in range(N_LAYERS):
        w = p_ref[W_H_OFF + i * H:W_H_OFF + (i + 1) * H, :]     # (H, H)
        b = p_ref[B_OFF + 1 + i:B_OFF + 2 + i, :]               # (1, H)
        h = jnp.maximum(
            jnp.dot(h, w, preferred_element_type=jnp.float32) + b, 0.0)

    # adaptation_layer: Linear(H, H//2) + ReLU, zero-padded to H output cols
    # (padded cols stay exactly 0 after bias+ReLU, so downstream math is exact).
    w_ad = p_ref[W_AD_OFF:W_AD_OFF + H, :]                      # (H, H)
    b_ad = p_ref[B_OFF + 1 + N_LAYERS:B_OFF + 2 + N_LAYERS, :]  # (1, H)
    h = jnp.maximum(
        jnp.dot(h, w_ad, preferred_element_type=jnp.float32) + b_ad, 0.0)

    # fused heads: [out_class | aux_class] as one matmul, one (B, 4) store.
    w_hd = p_ref[W_HEAD_OFF:W_HEAD_OFF + H, :]                  # (H, H), zero-padded
    b_hd = p_ref[B_OFF + 2 + N_LAYERS:B_OFF + 3 + N_LAYERS, :]  # (1, H)
    z = jnp.dot(h, w_hd, preferred_element_type=jnp.float32) + b_hd
    o_ref[...] = z[:, :N_HEADS_OUT]


def init_params(key):
    """Deterministic params; PyTorch-Linear-style uniform(-1/sqrt(fan_in), +)."""
    def linear(k, fan_in, fan_out):
        kw, kb = jax.random.split(k)
        lim = 1.0 / jnp.sqrt(fan_in)
        w = jax.random.uniform(kw, (fan_in, fan_out), jnp.float32, -lim, lim)
        b = jax.random.uniform(kb, (1, fan_out), jnp.float32, -lim, lim)
        return w, b

    ks = jax.random.split(key, 5 + N_LAYERS)
    w_in, b_in = linear(ks[0], N_IN, N_HIDDEN)

    w_h_list, b_h_list = [], []
    for i in range(N_LAYERS):
        w, b = linear(ks[1 + i], N_HIDDEN, N_HIDDEN)
        w_h_list.append(w)
        b_h_list.append(b)
    w_h = jnp.stack(w_h_list)                    # (N_LAYERS, H, H)
    b_h = jnp.stack(b_h_list)                    # (N_LAYERS, 1, H)

    w_ad, b_ad = linear(ks[1 + N_LAYERS], N_HIDDEN, N_ADAPT)
    w_out, b_out = linear(ks[2 + N_LAYERS], N_ADAPT, N_OUT)
    w_aux, b_aux = linear(ks[3 + N_LAYERS], N_ADAPT, N_CLASSES)
    return (w_in, b_in, w_h, b_h, w_ad, b_ad, w_out, b_out, w_aux, b_aux)


def pack_params(params):
    """Pack all weights & biases into a single (TOTAL_ROWS, H) f32 VMEM slab."""
    (w_in, b_in, w_h, b_h, w_ad, b_ad, w_out, b_out, w_aux, b_aux) = params

    def padto(a, rows, cols):
        out = jnp.zeros((rows, cols), jnp.float32)
        return out.at[:a.shape[0], :a.shape[1]].set(a.astype(jnp.float32))

    w_head = jnp.concatenate([w_out, w_aux], axis=1)      # (N_ADAPT, 4)
    b_head = jnp.concatenate([b_out, b_aux], axis=1)      # (1, 4)

    bias_rows = jnp.concatenate(
        [b_in] + [b_h[i] for i in range(N_LAYERS)]
        + [padto(b_ad, 1, H), padto(b_head, 1, H)], axis=0)          # (N_BIAS_ROWS, H)

    slab = jnp.concatenate(
        [padto(w_in, 8, H)]                                          # rows 0:8
        + [w_h[i] for i in range(N_LAYERS)]                          # hidden weights
        + [padto(w_ad, H, H),                                        # adaptation
           padto(w_head, H, H),                                      # fused heads
           padto(bias_rows, BIAS_BLOCK, H)],                         # biases
        axis=0)
    assert slab.shape == (TOTAL_ROWS, H)
    return slab


def mlp_forward(x, param_slab):
    B = x.shape[0]
    x = x.reshape(B, -1).astype(jnp.float32)     # nn.Flatten
    vmem = pl.BlockSpec(memory_space=pltpu.MemorySpace.VMEM)
    out = pl.pallas_call(
        mlp_kernel,
        out_shape=jax.ShapeDtypeStruct((B, N_HEADS_OUT), jnp.float32),
        in_specs=[vmem, vmem],
        out_specs=vmem,
    )(x, param_slab)
    # split the fused head output back into (out_class, aux_class)
    return out[:, :N_OUT], out[:, N_OUT:N_OUT + N_CLASSES]


def mlp_reference(x, params):
    (w_in, b_in, w_h, b_h, w_ad, b_ad, w_out, b_out, w_aux, b_aux) = params
    h = x.reshape(x.shape[0], -1).astype(jnp.float32)
    h = jnp.maximum(h @ w_in + b_in, 0.0)
    for i in range(N_LAYERS):
        h = jnp.maximum(h @ w_h[i] + b_h[i], 0.0)
    h = jnp.maximum(h @ w_ad + b_ad, 0.0)
    return h @ w_out + b_out, h @ w_aux + b_aux


if __name__ == "__main__":
    key = jax.random.PRNGKey(0)
    k_x, k_p = jax.random.split(key)
    x = jax.random.normal(k_x, (BATCH, N_IN), jnp.float32)
    params = init_params(k_p)
    slab = pack_params(params)

    c, a = mlp_forward(x, slab)
    jax.block_until_ready((c, a))

    c_ref, a_ref = mlp_reference(x, params)
    assert c.shape == (BATCH, N_OUT) and a.shape == (BATCH, N_CLASSES)
    assert jnp.allclose(c, c_ref, atol=1e-5, rtol=1e-5)
    assert jnp.allclose(a, a_ref, atol=1e-5, rtol=1e-5)
    print("KERNEL_OK")
</pallas_src>

<mosaic_0001>
module attributes {stable_mosaic.version = 11 : i64} {
  func.func @mlp_kernel(%arg0: memref<8x2xf32, #tpu.memory_space<vmem>>, %arg1: memref<144x32xf32, #tpu.memory_space<vmem>>, %arg2: memref<8x4xf32, #tpu.memory_space<vmem>>) attributes {dimension_semantics = [], scalar_prefetch = 0 : i64, scratch_operands = 0 : i64, tpu.core_type = #tpu.core_type<tc>} {
    %c0 = arith.constant 0 : index
    %c0_0 = arith.constant 0 : index
    %0 = vector.load %arg0[%c0, %c0_0] : memref<8x2xf32, #tpu.memory_space<vmem>>, vector<8x2xf32>
    %1 = vector.extract_strided_slice %0 {offsets = [0, 0], sizes = [8, 1], strides = [1, 1]} : vector<8x2xf32> to vector<8x1xf32>
    %c0_1 = arith.constant 0 : index
    %c0_2 = arith.constant 0 : index
    %2 = vector.load %arg1[%c0_1, %c0_2] : memref<144x32xf32, #tpu.memory_space<vmem>>, vector<1x32xf32>
    %3 = vector.broadcast %1 : vector<8x1xf32> to vector<8x32xf32>
    %4 = vector.broadcast %2 : vector<1x32xf32> to vector<8x32xf32>
    %5 = arith.mulf %3, %4 : vector<8x32xf32>
    %6 = vector.extract_strided_slice %0 {offsets = [0, 1], sizes = [8, 1], strides = [1, 1]} : vector<8x2xf32> to vector<8x1xf32>
    %c1 = arith.constant 1 : index
    %c0_3 = arith.constant 0 : index
    %7 = vector.load %arg1[%c1, %c0_3] : memref<144x32xf32, #tpu.memory_space<vmem>>, vector<1x32xf32>
    %8 = vector.broadcast %6 : vector<8x1xf32> to vector<8x32xf32>
    %9 = vector.broadcast %7 : vector<1x32xf32> to vector<8x32xf32>
    %10 = arith.mulf %8, %9 : vector<8x32xf32>
    %11 = arith.addf %5, %10 : vector<8x32xf32>
    %c136 = arith.constant 136 : index
    %c0_4 = arith.constant 0 : index
    %12 = vector.load %arg1[%c136, %c0_4] : memref<144x32xf32, #tpu.memory_space<vmem>>, vector<1x32xf32>
    %13 = vector.broadcast %12 : vector<1x32xf32> to vector<8x32xf32>
    %14 = arith.addf %11, %13 : vector<8x32xf32>
    %cst = arith.constant 0.000000e+00 : f32
    %15 = vector.broadcast %cst : f32 to vector<8x32xf32>
    %16 = arith.maximumf %14, %15 : vector<8x32xf32>
    %c8 = arith.constant 8 : index
    %c0_5 = arith.constant 0 : index
    %17 = vector.load %arg1[%c8, %c0_5] : memref<144x32xf32, #tpu.memory_space<vmem>>, vector<32x32xf32>
    %c137 = arith.constant 137 : index
    %c0_6 = arith.constant 0 : index
    %18 = vector.load %arg1[%c137, %c0_6] : memref<144x32xf32, #tpu.memory_space<vmem>>, vector<1x32xf32>
    %cst_7 = arith.constant dense<0.000000e+00> : vector<8x32xf32>
    %19 = tpu.matmul %16, %17, %cst_7 {dimension_numbers = #tpu.dot_dimension_numbers<[1], [0], [0], [1], [0, 0, 1, 1], [], []>} : vector<8x32xf32>, vector<32x32xf32>, vector<8x32xf32> -> vector<8x32xf32>
    %20 = vector.broadcast %18 : vector<1x32xf32> to vector<8x32xf32>
    %21 = arith.addf %19, %20 : vector<8x32xf32>
    %cst_8 = arith.constant 0.000000e+00 : f32
    %22 = vector.broadcast %cst_8 : f32 to vector<8x32xf32>
    %23 = arith.maximumf %21, %22 : vector<8x32xf32>
    %c40 = arith.constant 40 : index
    %c0_9 = arith.constant 0 : index
    %24 = vector.load %arg1[%c40, %c0_9] : memref<144x32xf32, #tpu.memory_space<vmem>>, vector<32x32xf32>
    %c138 = arith.constant 138 : index
    %c0_10 = arith.constant 0 : index
    %25 = vector.load %arg1[%c138, %c0_10] : memref<144x32xf32, #tpu.memory_space<vmem>>, vector<1x32xf32>
    %cst_11 = arith.constant dense<0.000000e+00> : vector<8x32xf32>
    %26 = tpu.matmul %23, %24, %cst_11 {dimension_numbers = #tpu.dot_dimension_numbers<[1], [0], [0], [1], [0, 0, 1, 1], [], []>} : vector<8x32xf32>, vector<32x32xf32>, vector<8x32xf32> -> vector<8x32xf32>
    %27 = vector.broadcast %25 : vector<1x32xf32> to vector<8x32xf32>
    %28 = arith.addf %26, %27 : vector<8x32xf32>
    %cst_12 = arith.constant 0.000000e+00 : f32
    %29 = vector.broadcast %cst_12 : f32 to vector<8x32xf32>
    %30 = arith.maximumf %28, %29 : vector<8x32xf32>
    %c72 = arith.constant 72 : index
    %c0_13 = arith.constant 0 : index
    %31 = vector.load %arg1[%c72, %c0_13] : memref<144x32xf32, #tpu.memory_space<vmem>>, vector<32x32xf32>
    %c139 = arith.constant 139 : index
    %c0_14 = arith.constant 0 : index
    %32 = vector.load %arg1[%c139, %c0_14] : memref<144x32xf32, #tpu.memory_space<vmem>>, vector<1x32xf32>
    %cst_15 = arith.constant dense<0.000000e+00> : vector<8x32xf32>
    %33 = tpu.matmul %30, %31, %cst_15 {dimension_numbers = #tpu.dot_dimension_numbers<[1], [0], [0], [1], [0, 0, 1, 1], [], []>} : vector<8x32xf32>, vector<32x32xf32>, vector<8x32xf32> -> vector<8x32xf32>
    %34 = vector.broadcast %32 : vector<1x32xf32> to vector<8x32xf32>
    %35 = arith.addf %33, %34 : vector<8x32xf32>
    %cst_16 = arith.constant 0.000000e+00 : f32
    %36 = vector.broadcast %cst_16 : f32 to vector<8x32xf32>
    %37 = arith.maximumf %35, %36 : vector<8x32xf32>
    %c104 = arith.constant 104 : index
    %c0_17 = arith.constant 0 : index
    %38 = vector.load %arg1[%c104, %c0_17] : memref<144x32xf32, #tpu.memory_space<vmem>>, vector<32x32xf32>
    %c140 = arith.constant 140 : index
    %c0_18 = arith.constant 0 : index
    %39 = vector.load %arg1[%c140, %c0_18] : memref<144x32xf32, #tpu.memory_space<vmem>>, vector<1x32xf32>
    %cst_19 = arith.constant dense<0.000000e+00> : vector<8x32xf32>
    %40 = tpu.matmul %37, %38, %cst_19 {dimension_numbers = #tpu.dot_dimension_numbers<[1], [0], [0], [1], [0, 0, 1, 1], [], []>} : vector<8x32xf32>, vector<32x32xf32>, vector<8x32xf32> -> vector<8x32xf32>
    %41 = vector.broadcast %39 : vector<1x32xf32> to vector<8x32xf32>
    %42 = arith.addf %40, %41 : vector<8x32xf32>
    %43 = vector.extract_strided_slice %42 {offsets = [0, 0], sizes = [8, 4], strides = [1, 1]} : vector<8x32xf32> to vector<8x4xf32>
    %c0_20 = arith.constant 0 : index
    %c0_21 = arith.constant 0 : index
    %44 = vector.load %arg2[%c0_20, %c0_21] : memref<8x4xf32, #tpu.memory_space<vmem>>, vector<8x4xf32>
    tpu.vector_store %arg2[%c0_20, %c0_21], %43 {strides = array<i32>} : memref<8x4xf32, #tpu.memory_space<vmem>>, vector<8x4xf32>,
    return
  }
}

</mosaic_0001>

<llo_original>
// kernel: tpu_custom_call.1
$region0: #{tpu_custom_call.1}
  #allocation0 [shape = 'u32[]', space=smem, size = 0x4, offset = 0x4, fixed_abs, tag = 'smem constant byte address 0x4 - core index']
  #allocation1 [shape = 'u32[144,128]{1,0:T(1,128)}', space=vmem, size = 0x12000, scoped, tag = 'internal scratch']
  %s0 = inlined_call_operand.vmem [shape: f32[8,2], index: 0, kind: input, shape index: {}]
  %s1 = inlined_call_operand.vmem [shape: f32[144,32], index: 1, kind: input, shape index: {}]
  %s2 = inlined_call_operand.vmem [shape: f32[8,4], index: 2, kind: output, shape index: {}]
  %s3 = sld [smem:[#allocation0]]
  $region18: #{tpu_custom_call.1} parent=0
    _
  %s5 = ssub.s32 1, %s3
  %s6 = scalar_select 0, %s5, %s3
  // Predicated region
  $region2: #{tpu_custom_call.1} parent=0 // pred_check
    _
  $region3: #{tpu_custom_call.1} parent=0 // pred_check_branch
    %8 = sbr.rel (0) target = $region5
  $region4: #{tpu_custom_call.1} parent=0 // pred_region
    _
  $region5: #{tpu_custom_call.1} parent=0 // pred_fallthru
    _
  // Predicated region
  $region6: #{tpu_custom_call.1} parent=0 // pred_check
    _
  $region7: #{tpu_custom_call.1} parent=0 // pred_check_branch
    %10 = sbr.rel (0) target = $region9
  $region8: #{tpu_custom_call.1} parent=0 // pred_region
    _
  $region9: #{tpu_custom_call.1} parent=0 // pred_fallthru
    _
  %v11 = vld [vmem:[%s0] sm:$0xff]
  %v12 = vld [vmem:[%s1] sm:$0x1]
  %14 = vset.pattern.permute.xlu0 0
  %15 = vperm.xlu0 %14, %v11
  %v16 = vpop.permute.xlu0 %15
  %v18 = vlaneseq
  %v19 = vshrl.u32 %v18, 7
  %v20 = vsub.s32 0, %v19
  %v21 = vrot.slane %v12, %v20
  %v22 = vmul.f32 %v16, %v21
  %v23 = vld [vmem:[%s1 + $0x1] sm:$0x1]
  %24 = vset.pattern.permute.xlu0 1
  %25 = vperm.xlu0 %24, %v11
  %v26 = vpop.permute.xlu0 %25
  %v28 = vlaneseq
  %v29 = vshrl.u32 %v28, 7
  %v30 = vsub.s32 0, %v29
  %v31 = vrot.slane %v23, %v30
  %v32 = vmul.f32 %v26, %v31
  %v33 = vadd.f32 %v22, %v32
  %v34 = vld [vmem:[%s1 + $0x88] sm:$0x1]
  %v35 = vlaneseq
  %v36 = vshrl.u32 %v35, 7
  %v37 = vsub.s32 0, %v36
  %v38 = vrot.slane %v34, %v37
  %v39 = vadd.f32 %v33, %v38
  %v40 = vmax.f32 %v39, 0.0
  %v41 = vld [vmem:[%s1 + $0x8] sm:$0xff]
  %v42 = vld [vmem:[%s1 + $0x10] sm:$0xff]
  %v43 = vld [vmem:[%s1 + $0x18] sm:$0xff]
  %v44 = vld [vmem:[%s1 + $0x20] sm:$0xff]
  %v45 = vld [vmem:[%s1 + $0x89] sm:$0x1]
  %v46 = vlaneseq
  %v47 = vshrl.u32 %v46, 7
  %v48 = vsub.s32 0, %v47
  %v49 = vrot.slane %v45, %v48
  %vm50 = vcmask 261120
  %v52 = vsel %vm50, %v40, 0
  %54 = vmatprep.subr.mxu0 0.0
  %55 = vmatpush1.msra.mxu0 %v41
  %56 = vmatprep.subr.mxu0 0.0
  %57 = vmatpush1.msra.mxu0 %v42
  %58 = vmatprep.subr.mxu0 0.0
  %59 = vmatpush1.msra.mxu0 %v43
  %60 = vmatprep.subr.mxu0 0.0
  %61 = vmatpush1.msra.mxu0 %v44
  %62 = vmatprep.subr.mxu0 0.0
  %63 = vmatpush1.msra.mxu0 0.0
  %64 = vmatprep.subr.mxu0 0.0
  %65 = vmatpush1.msra.mxu0 0.0
  %66 = vmatprep.subr.mxu0 0.0
  %67 = vmatpush1.msra.mxu0 0.0
  %68 = vmatprep.subr.mxu0 0.0
  %69 = vmatpush1.msra.mxu0 0.0
  %70 = vmatprep.subr.mxu0 0.0
  %71 = vmatpush1.msra.mxu0 0.0
  %72 = vmatprep.subr.mxu0 0.0
  %73 = vmatpush1.msra.mxu0 0.0
  %74 = vmatprep.subr.mxu0 0.0
  %75 = vmatpush1.msra.mxu0 0.0
  %76 = vmatprep.subr.mxu0 0.0
  %77 = vmatpush1.msra.mxu0 0.0
  %78 = vmatprep.subr.mxu0 0.0
  %79 = vmatpush1.msra.mxu0 0.0
  %80 = vmatprep.subr.mxu0 0.0
  %81 = vmatpush1.msra.mxu0 0.0
  %82 = vmatprep.subr.mxu0 0.0
  %83 = vmatpush1.msra.mxu0 0.0
  %84 = vmatprep.subr.mxu0 0.0
  %85 = vmatpush1.msra.mxu0 0.0
  %86 = vmatprep.subr.mxu0 0.0
  %87 = vmatpush1.msra.mxu0 0.0
  %88 = vmatprep.subr.mxu0 0.0
  %89 = vmatpush1.msra.mxu0 0.0
  %90 = vmatprep.subr.mxu0 0.0
  %91 = vmatpush1.msra.mxu0 0.0
  %92 = vmatprep.subr.mxu0 0.0
  %93 = vmatpush1.msra.mxu0 0.0
  %94 = vmatprep.subr.mxu0 0.0
  %95 = vmatpush1.msra.mxu0 0.0
  %96 = vmatprep.subr.mxu0 0.0
  %97 = vmatpush1.msra.mxu0 0.0
  %98 = vmatprep.subr.mxu0 0.0
  %99 = vmatpush1.msra.mxu0 0.0
  %100 = vmatprep.subr.mxu0 0.0
  %101 = vmatpush1.msra.mxu0 0.0
  %102 = vmatprep.subr.mxu0 0.0
  %103 = vmatpush1.msra.mxu0 0.0
  %104 = vmatprep.subr.mxu0 0.0
  %105 = vmatpush1.msra.mxu0 0.0
  %106 = vmatprep.subr.mxu0 0.0
  %107 = vmatpush1.msra.mxu0 0.0
  %108 = vmatprep.subr.mxu0 0.0
  %109 = vmatpush1.msra.mxu0 0.0
  %110 = vmatprep.subr.mxu0 0.0
  %111 = vmatpush1.msra.mxu0 0.0
  %112 = vmatprep.subr.mxu0 0.0
  %113 = vmatpush1.msra.mxu0 0.0
  %114 = vmatprep.subr.mxu0 0.0
  %115 = vmatpush1.msra.mxu0 0.0
  %116 = vmatprep.subr.mxu0 0.0
  %117 = vmatpush1.msra.mxu0 0.0
  %118 = vmatprep.mubr.f32.mxu0 0.0
  %119 = vmatmul.mubr.f32.gmra.mrb[0].mxu0 %v52
  %v120 = vpop.f32.mrb[0].mxu0
  %v121 = vadd.f32 %v49, %v120
  %v122 = vpop.f32.mrb[0].mxu0
  %123 = vdwg.mxu0
  %v124 = vmax.f32 %v121, 0.0
  %v125 = vld [vmem:[%s1 + $0x28] sm:$0xff]
  %v126 = vld [vmem:[%s1 + $0x30] sm:$0xff]
  %v127 = vld [vmem:[%s1 + $0x38] sm:$0xff]
  %v128 = vld [vmem:[%s1 + $0x40] sm:$0xff]
  %v129 = vld [vmem:[%s1 + $0x8a] sm:$0x1]
  %v130 = vlaneseq
  %v131 = vshrl.u32 %v130, 7
  %v132 = vsub.s32 0, %v131
  %v133 = vrot.slane %v129, %v132
  %v135 = vsel %vm50, %v124, 0
  %137 = vmatprep.subr.mxu0 0.0
  %138 = vmatpush1.msra.mxu0 %v125
  %139 = vmatprep.subr.mxu0 0.0
  %140 = vmatpush1.msra.mxu0 %v126
  %141 = vmatprep.subr.mxu0 0.0
  %142 = vmatpush1.msra.mxu0 %v127
  %143 = vmatprep.subr.mxu0 0.0
  %144 = vmatpush1.msra.mxu0 %v128
  %145 = vmatprep.subr.mxu0 0.0
  %146 = vmatpush1.msra.mxu0 0.0
  %147 = vmatprep.subr.mxu0 0.0
  %148 = vmatpush1.msra.mxu0 0.0
  %149 = vmatprep.subr.mxu0 0.0
  %150 = vmatpush1.msra.mxu0 0.0
  %151 = vmatprep.subr.mxu0 0.0
  %152 = vmatpush1.msra.mxu0 0.0
  %153 = vmatprep.subr.mxu0 0.0
  %154 = vmatpush1.msra.mxu0 0.0
  %155 = vmatprep.subr.mxu0 0.0
  %156 = vmatpush1.msra.mxu0 0.0
  %157 = vmatprep.subr.mxu0 0.0
  %158 = vmatpush1.msra.mxu0 0.0
  %159 = vmatprep.subr.mxu0 0.0
  %160 = vmatpush1.msra.mxu0 0.0
  %161 = vmatprep.subr.mxu0 0.0
  %162 = vmatpush1.msra.mxu0 0.0
  %163 = vmatprep.subr.mxu0 0.0
  %164 = vmatpush1.msra.mxu0 0.0
  %165 = vmatprep.subr.mxu0 0.0
  %166 = vmatpush1.msra.mxu0 0.0
  %167 = vmatprep.subr.mxu0 0.0
  %168 = vmatpush1.msra.mxu0 0.0
  %169 = vmatprep.subr.mxu0 0.0
  %170 = vmatpush1.msra.mxu0 0.0
  %171 = vmatprep.subr.mxu0 0.0
  %172 = vmatpush1.msra.mxu0 0.0
  %173 = vmatprep.subr.mxu0 0.0
  %174 = vmatpush1.msra.mxu0 0.0
  %175 = vmatprep.subr.mxu0 0.0
  %176 = vmatpush1.msra.mxu0 0.0
  %177 = vmatprep.subr.mxu0 0.0
  %178 = vmatpush1.msra.mxu0 0.0
  %179 = vmatprep.subr.mxu0 0.0
  %180 = vmatpush1.msra.mxu0 0.0
  %181 = vmatprep.subr.mxu0 0.0
  %182 = vmatpush1.msra.mxu0 0.0
  %183 = vmatprep.subr.mxu0 0.0
  %184 = vmatpush1.msra.mxu0 0.0
  %185 = vmatprep.subr.mxu0 0.0
  %186 = vmatpush1.msra.mxu0 0.0
  %187 = vmatprep.subr.mxu0 0.0
  %188 = vmatpush1.msra.mxu0 0.0
  %189 = vmatprep.subr.mxu0 0.0
  %190 = vmatpush1.msra.mxu0 0.0
  %191 = vmatprep.subr.mxu0 0.0
  %192 = vmatpush1.msra.mxu0 0.0
  %193 = vmatprep.subr.mxu0 0.0
  %194 = vmatpush1.msra.mxu0 0.0
  %195 = vmatprep.subr.mxu0 0.0
  %196 = vmatpush1.msra.mxu0 0.0
  %197 = vmatprep.subr.mxu0 0.0
  %198 = vmatpush1.msra.mxu0 0.0
  %199 = vmatprep.subr.mxu0 0.0
  %200 = vmatpush1.msra.mxu0 0.0
  %201 = vmatprep.mubr.f32.mxu0 0.0
  %202 = vmatmul.mubr.f32.gmra.mrb[0].mxu0 %v135
  %v203 = vpop.f32.mrb[0].mxu0
  %v204 = vadd.f32 %v133, %v203
  %v205 = vpop.f32.mrb[0].mxu0
  %206 = vdwg.mxu0
  %v207 = vmax.f32 %v204, 0.0
  %v208 = vld [vmem:[%s1 + $0x48] sm:$0xff]
  %v209 = vld [vmem:[%s1 + $0x50] sm:$0xff]
  %v210 = vld [vmem:[%s1 + $0x58] sm:$0xff]
  %v211 = vld [vmem:[%s1 + $0x60] sm:$0xff]
  %v212 = vld [vmem:[%s1 + $0x8b] sm:$0x1]
  %v213 = vlaneseq
  %v214 = vshrl.u32 %v213, 7
  %v215 = vsub.s32 0, %v214
  %v216 = vrot.slane %v212, %v215
  %v218 = vsel %vm50, %v207, 0
  %220 = vmatprep.subr.mxu0 0.0
  %221 = vmatpush1.msra.mxu0 %v208
  %222 = vmatprep.subr.mxu0 0.0
  %223 = vmatpush1.msra.mxu0 %v209
  %224 = vmatprep.subr.mxu0 0.0
  %225 = vmatpush1.msra.mxu0 %v210
  %226 = vmatprep.subr.mxu0 0.0
  %227 = vmatpush1.msra.mxu0 %v211
  %228 = vmatprep.subr.mxu0 0.0
  %229 = vmatpush1.msra.mxu0 0.0
  %230 = vmatprep.subr.mxu0 0.0
  %231 = vmatpush1.msra.mxu0 0.0
  %232 = vmatprep.subr.mxu0 0.0
  %233 = vmatpush1.msra.mxu0 0.0
  %234 = vmatprep.subr.mxu0 0.0
  %235 = vmatpush1.msra.mxu0 0.0
  %236 = vmatprep.subr.mxu0 0.0
  %237 = vmatpush1.msra.mxu0 0.0
  %238 = vmatprep.subr.mxu0 0.0
  %239 = vmatpush1.msra.mxu0 0.0
  %240 = vmatprep.subr.mxu0 0.0
  %241 = vmatpush1.msra.mxu0 0.0
  %242 = vmatprep.subr.mxu0 0.0
  %243 = vmatpush1.msra.mxu0 0.0
  %244 = vmatprep.subr.mxu0 0.0
  %245 = vmatpush1.msra.mxu0 0.0
  %246 = vmatprep.subr.mxu0 0.0
  %247 = vmatpush1.msra.mxu0 0.0
  %248 = vmatprep.subr.mxu0 0.0
  %249 = vmatpush1.msra.mxu0 0.0
  %250 = vmatprep.subr.mxu0 0.0
  %251 = vmatpush1.msra.mxu0 0.0
  %252 = vmatprep.subr.mxu0 0.0
  %253 = vmatpush1.msra.mxu0 0.0
  %254 = vmatprep.subr.mxu0 0.0
  %255 = vmatpush1.msra.mxu0 0.0
  %256 = vmatprep.subr.mxu0 0.0
  %257 = vmatpush1.msra.mxu0 0.0
  %258 = vmatprep.subr.mxu0 0.0
  %259 = vmatpush1.msra.mxu0 0.0
  %260 = vmatprep.subr.mxu0 0.0
  %261 = vmatpush1.msra.mxu0 0.0
  %262 = vmatprep.subr.mxu0 0.0
  %263 = vmatpush1.msra.mxu0 0.0
  %264 = vmatprep.subr.mxu0 0.0
  %265 = vmatpush1.msra.mxu0 0.0
  %266 = vmatprep.subr.mxu0 0.0
  %267 = vmatpush1.msra.mxu0 0.0
  %268 = vmatprep.subr.mxu0 0.0
  %269 = vmatpush1.msra.mxu0 0.0
  %270 = vmatprep.subr.mxu0 0.0
  %271 = vmatpush1.msra.mxu0 0.0
  %272 = vmatprep.subr.mxu0 0.0
  %273 = vmatpush1.msra.mxu0 0.0
  %274 = vmatprep.subr.mxu0 0.0
  %275 = vmatpush1.msra.mxu0 0.0
  %276 = vmatprep.subr.mxu0 0.0
  %277 = vmatpush1.msra.mxu0 0.0
  %278 = vmatprep.subr.mxu0 0.0
  %279 = vmatpush1.msra.mxu0 0.0
  %280 = vmatprep.subr.mxu0 0.0
  %281 = vmatpush1.msra.mxu0 0.0
  %282 = vmatprep.subr.mxu0 0.0
  %283 = vmatpush1.msra.mxu0 0.0
  %284 = vmatprep.mubr.f32.mxu0 0.0
  %285 = vmatmul.mubr.f32.gmra.mrb[0].mxu0 %v218
  %v286 = vpop.f32.mrb[0].mxu0
  %v287 = vadd.f32 %v216, %v286
  %v288 = vpop.f32.mrb[0].mxu0
  %289 = vdwg.mxu0
  %v290 = vmax.f32 %v287, 0.0
  %v291 = vld [vmem:[%s1 + $0x68] sm:$0xff]
  %v292 = vld [vmem:[%s1 + $0x70] sm:$0xff]
  %v293 = vld [vmem:[%s1 + $0x78] sm:$0xff]
  %v294 = vld [vmem:[%s1 + $0x80] sm:$0xff]
  %v295 = vld [vmem:[%s1 + $0x8c] sm:$0x1]
  %v296 = vlaneseq
  %v297 = vshrl.u32 %v296, 7
  %v298 = vsub.s32 0, %v297
  %v299 = vrot.slane %v295, %v298
  %v301 = vsel %vm50, %v290, 0
  %303 = vmatprep.subr.mxu0 0.0
  %304 = vmatpush1.msra.mxu0 %v291
  %305 = vmatprep.subr.mxu0 0.0
  %306 = vmatpush1.msra.mxu0 %v292
  %307 = vmatprep.subr.mxu0 0.0
  %308 = vmatpush1.msra.mxu0 %v293
  %309 = vmatprep.subr.mxu0 0.0
  %310 = vmatpush1.msra.mxu0 %v294
  %311 = vmatprep.subr.mxu0 0.0
  %312 = vmatpush1.msra.mxu0 0.0
  %313 = vmatprep.subr.mxu0 0.0
  %314 = vmatpush1.msra.mxu0 0.0
  %315 = vmatprep.subr.mxu0 0.0
  %316 = vmatpush1.msra.mxu0 0.0
  %317 = vmatprep.subr.mxu0 0.0
  %318 = vmatpush1.msra.mxu0 0.0
  %319 = vmatprep.subr.mxu0 0.0
  %320 = vmatpush1.msra.mxu0 0.0
  %321 = vmatprep.subr.mxu0 0.0
  %322 = vmatpush1.msra.mxu0 0.0
  %323 = vmatprep.subr.mxu0 0.0
  %324 = vmatpush1.msra.mxu0 0.0
  %325 = vmatprep.subr.mxu0 0.0
  %326 = vmatpush1.msra.mxu0 0.0
  %327 = vmatprep.subr.mxu0 0.0
  %328 = vmatpush1.msra.mxu0 0.0
  %329 = vmatprep.subr.mxu0 0.0
  %330 = vmatpush1.msra.mxu0 0.0
  %331 = vmatprep.subr.mxu0 0.0
  %332 = vmatpush1.msra.mxu0 0.0
  %333 = vmatprep.subr.mxu0 0.0
  %334 = vmatpush1.msra.mxu0 0.0
  %335 = vmatprep.subr.mxu0 0.0
  %336 = vmatpush1.msra.mxu0 0.0
  %337 = vmatprep.subr.mxu0 0.0
  %338 = vmatpush1.msra.mxu0 0.0
  %339 = vmatprep.subr.mxu0 0.0
  %340 = vmatpush1.msra.mxu0 0.0
  %341 = vmatprep.subr.mxu0 0.0
  %342 = vmatpush1.msra.mxu0 0.0
  %343 = vmatprep.subr.mxu0 0.0
  %344 = vmatpush1.msra.mxu0 0.0
  %345 = vmatprep.subr.mxu0 0.0
  %346 = vmatpush1.msra.mxu0 0.0
  %347 = vmatprep.subr.mxu0 0.0
  %348 = vmatpush1.msra.mxu0 0.0
  %349 = vmatprep.subr.mxu0 0.0
  %350 = vmatpush1.msra.mxu0 0.0
  %351 = vmatprep.subr.mxu0 0.0
  %352 = vmatpush1.msra.mxu0 0.0
  %353 = vmatprep.subr.mxu0 0.0
  %354 = vmatpush1.msra.mxu0 0.0
  %355 = vmatprep.subr.mxu0 0.0
  %356 = vmatpush1.msra.mxu0 0.0
  %357 = vmatprep.subr.mxu0 0.0
  %358 = vmatpush1.msra.mxu0 0.0
  %359 = vmatprep.subr.mxu0 0.0
  %360 = vmatpush1.msra.mxu0 0.0
  %361 = vmatprep.subr.mxu0 0.0
  %362 = vmatpush1.msra.mxu0 0.0
  %363 = vmatprep.subr.mxu0 0.0
  %364 = vmatpush1.msra.mxu0 0.0
  %365 = vmatprep.subr.mxu0 0.0
  %366 = vmatpush1.msra.mxu0 0.0
  %367 = vmatprep.mubr.f32.mxu0 0.0
  %368 = vmatmul.mubr.f32.gmra.mrb[0].mxu0 %v301
  %v369 = vpop.f32.mrb[0].mxu0
  %v370 = vadd.f32 %v299, %v369
  %v371 = vpop.f32.mrb[0].mxu0
  %372 = vdwg.mxu0
  %vm373 = vcmask 31744
  %374 = vst.msk [vmem:[%s2] sm:$0xff] %vm373, %v370
  // Predicated region
  $region10: #{tpu_custom_call.1} parent=0 // pred_check
    _
  $region11: #{tpu_custom_call.1} parent=0 // pred_check_branch
    %376 = sbr.rel (0) target = $region13
  $region12: #{tpu_custom_call.1} parent=0 // pred_region
    _
  $region13: #{tpu_custom_call.1} parent=0 // pred_fallthru
    _
  // Predicated region
  $region14: #{tpu_custom_call.1} parent=0 // pred_check
    _
  $region15: #{tpu_custom_call.1} parent=0 // pred_check_branch
    %378 = sbr.rel (0) target = $region17
  $region16: #{tpu_custom_call.1} parent=0 // pred_region
    _
  $region17: #{tpu_custom_call.1} parent=0 // pred_fallthru
    _

</llo_original>
